<compile_context>
chip_gen: v7x
topology: tpu7x:2x2x1
jax: 0.10.0
libtpu: 0.0.40
codegen_flags: <defaults>
</compile_context>

<pallas_src>
import functools

import jax
import jax.numpy as jnp
from jax.experimental import pallas as pl
from jax.experimental.pallas import tpu as pltpu


_VMEM_LIMIT = 48 * 1024 * 1024          # <= v7x's 64 MiB physical per TC; safe on v5e/v6e
_VMEM_BLOCK_BUDGET = 36 * 1024 * 1024   # budget for double-buffered blocks + intermediates


def _round_up(x, m):
    return ((x + m - 1) // m) * m


def _dkt_loss_kernel(pred_ref, batch_ref, loss_ref, p_ref, a_ref, *, Q, T):
    pred = pred_ref[...]                           # [Bt, T, Q]   f32
    b = batch_ref[...]                             # [Bt, T, 2Q]  native dtype (f32 or bf16)
    qpart = b[:, :, :Q]                            # answered-correct one-hot
    wpart = b[:, :, Q:]                            # answered-wrong   one-hot

    # p[s, t] = dot(pred[s, t], delta[s, t+1])  -> [Bt, T-1]
    # (VPU multiply + XLU lane-reduce; deliberately NOT an MXU matmul-and-take-diag.)
    delta_next = (qpart[:, 1:, :] + wpart[:, 1:, :]).astype(jnp.float32)
    p = jnp.sum(pred[:, :T - 1, :] * delta_next, axis=-1)

    # a[s, t] = floor((sum_q(q - w)[s, t+1] + 1) / 2)  -> [Bt, T-1]
    # (reduce in the native batch dtype — exact for 0/1 one-hots — cast the small result)
    diff = jnp.sum(qpart - wpart, axis=-1).astype(jnp.float32)      # [Bt, T]
    a = jnp.floor((diff[:, 1:] + 1.0) * 0.5)

    # Emulate PyTorch's "skip leading entries until the first p[t] > 0" trim with a mask.
    # If no p[t] > 0, PyTorch never slices -> full sequence -> start = 0.
    bt = p.shape[0]
    idx = jax.lax.broadcasted_iota(jnp.int32, (bt, T - 1), 1)
    pos = p > 0.0
    any_pos = jnp.max(pos.astype(jnp.int32), axis=-1, keepdims=True) > 0
    min_idx = jnp.min(jnp.where(pos, idx, T), axis=-1, keepdims=True)
    start = jnp.where(any_pos, min_idx, 0)                          # [Bt, 1]
    mask = (idx >= start).astype(jnp.float32)                       # [Bt, T-1]

    # BCE with PyTorch's log clamp at -100; masked-out entries get a safe placeholder.
    p_m = jnp.where(mask > 0.0, p, 0.5)
    log_p = jnp.where(p_m > 0.0, jnp.maximum(jnp.log(p_m), -100.0), -100.0)
    log_1mp = jnp.where(p_m < 1.0, jnp.maximum(jnp.log(1.0 - p_m), -100.0), -100.0)
    bce = -(a * log_p + (1.0 - a) * log_1mp)
    loss = (jnp.sum(bce * mask, axis=-1, keepdims=True)
            / jnp.sum(mask, axis=-1, keepdims=True))                # per-student mean [Bt, 1]

    loss_ref[...] = loss
    p_ref[...] = p
    a_ref[...] = a


def _pick_block_students(B, T, Q, batch_itemsize, max_block_students=None):
    """Largest Bt (multiple of 8) whose VMEM working set fits the budget.

    Models Mosaic's (sublane, lane) = (8, 128) tile padding of every block, double
    buffering of the two inputs, and the f32 in-kernel intermediates.
    """
    t_pad = _round_up(T, 8)
    q_pad = _round_up(Q, 128)
    q2_pad = _round_up(2 * Q, 128)
    per_student = (
        2 * t_pad * q_pad * 4                   # pred block (f32), double-buffered
        + 2 * t_pad * q2_pad * batch_itemsize   # batch block, double-buffered
        + 2 * t_pad * q_pad * 4                 # delta_next / product f32 intermediates
        + 8 * _round_up(T, 128) * 4             # p/a/bce/mask/... rows (lane-padded)
        + 128)
    bt = max(8, (_VMEM_BLOCK_BUDGET // per_student) // 8 * 8)
    bt = min(bt, _round_up(B, 8))               # never larger than the (8-rounded) batch
    # Keep >= 2 grid blocks when B allows it so the "parallel" student axis can occupy
    # both v7x TensorCores (one idle core would waste ~half of HBM bandwidth there).
    if B >= 16:
        bt = min(bt, _round_up((B + 1) // 2, 8))
    if max_block_students is not None:
        bt = min(bt, max(8, _round_up(max_block_students, 8)))
    return int(bt)


def dkt_loss(pred, batch, num_of_questions, max_step, max_block_students=None):
    B = pred.shape[0]
    Q = num_of_questions
    T = max_step
    assert pred.shape == (B, T, Q), pred.shape
    assert batch.shape == (B, T, 2 * Q), batch.shape

    if pred.dtype != jnp.float32:
        pred = pred.astype(jnp.float32)
    # batch is consumed in its incoming dtype (pass bf16 from upstream to halve its HBM
    # traffic; 0/1 one-hots are exact in bf16).  No wrapper-side cast or pad round trips.

    Bt = _pick_block_students(B, T, Q, batch.dtype.itemsize, max_block_students)
    num_blocks = pl.cdiv(B, Bt)   # ragged last block handled by Pallas partial-block writes

    kernel = functools.partial(_dkt_loss_kernel, Q=Q, T=T)
    bytes_accessed = int(pred.size * pred.dtype.itemsize
                         + batch.size * batch.dtype.itemsize
                         + B * (2 * (T - 1) + 1) * 4)
    cost = pl.CostEstimate(
        flops=int(4 * B * T * Q + 12 * B * (T - 1)),
        transcendentals=int(2 * B * (T - 1)),
        bytes_accessed=bytes_accessed)

    losses, p, a = pl.pallas_call(
        kernel,
        out_shape=(
            jax.ShapeDtypeStruct((B, 1), jnp.float32),        # per-student loss
            jax.ShapeDtypeStruct((B, T - 1), jnp.float32),    # per-student p (lane-dense)
            jax.ShapeDtypeStruct((B, T - 1), jnp.float32),    # per-student a (lane-dense)
        ),
        grid=(num_blocks,),
        in_specs=[
            pl.BlockSpec((Bt, T, Q), lambda s: (s, 0, 0)),
            pl.BlockSpec((Bt, T, 2 * Q), lambda s: (s, 0, 0)),
        ],
        out_specs=(
            pl.BlockSpec((Bt, 1), lambda s: (s, 0)),
            pl.BlockSpec((Bt, T - 1), lambda s: (s, 0)),
            pl.BlockSpec((Bt, T - 1), lambda s: (s, 0)),
        ),
        compiler_params=pltpu.CompilerParams(
            # No cross-step state -> the student axis can shard across v7x's two TCs.
            dimension_semantics=("parallel",),
            vmem_limit_bytes=_VMEM_LIMIT,
        ),
        cost_estimate=cost,
    )(pred, batch)

    loss = jnp.sum(losses)          # only the B valid students were ever written
    prediction = p.reshape(-1)
    ground_truth = a.reshape(-1)
    return loss, prediction, ground_truth


def _reference(pred, batch, Q, T):
    """Pure-JAX mirror of the PyTorch forward (sanity check)."""
    total = jnp.float32(0.0)
    preds, gts = [], []
    for s in range(pred.shape[0]):
        qpart = batch[s][:, :Q]
        wpart = batch[s][:, Q:2 * Q]
        delta = qpart + wpart
        p = jnp.sum(pred[s][:T - 1] * delta[1:], axis=-1)
        a = jnp.floor((jnp.sum(qpart - wpart, axis=-1) + 1.0) * 0.5)[1:]
        pos = p > 0
        start = int(jnp.argmax(pos)) if bool(jnp.any(pos)) else 0
        pp, aa = p[start:], a[start:]
        bce = -(aa * jnp.maximum(jnp.log(pp), -100.0)
                + (1.0 - aa) * jnp.maximum(jnp.log(1.0 - pp), -100.0))
        total = total + jnp.mean(bce)
        preds.append(p)
        gts.append(a)
    return total, jnp.concatenate(preds), jnp.concatenate(gts)


if __name__ == "__main__":
    def _make_case(key, B, T, Q, answer_prob):
        k1, k2, k3, k4 = jax.random.split(key, 4)
        # Predictions are sigmoid outputs in (0, 1).
        pred = jax.nn.sigmoid(jax.random.normal(k1, (B, T, Q), dtype=jnp.float32))
        qid = jax.random.randint(k2, (B, T), 0, Q)
        correct = jax.random.bernoulli(k3, 0.6, (B, T)).astype(jnp.float32)
        answered = jax.random.bernoulli(k4, answer_prob, (B, T)).astype(jnp.float32)
        onehot = jax.nn.one_hot(qid, Q, dtype=jnp.float32) * answered[..., None]
        batch = jnp.concatenate(
            [onehot * correct[..., None], onehot * (1.0 - correct[..., None])], axis=-1)
        return pred, batch

    key = jax.random.PRNGKey(0)
    k_a, k_b = jax.random.split(key)

    # Case 1: tiny batch (B < block) -> exercises the partial-block read/write path.
    # answer_prob < 1 leaves unanswered time-steps, exercising the leading-trim mask.
    B, T, Q = 2, 8, 16
    pred, batch = _make_case(k_a, B, T, Q, answer_prob=0.7)
    loss, prediction, ground_truth = jax.block_until_ready(
        dkt_loss(pred, batch, Q, T))
    ref_loss, ref_pred, ref_gt = _reference(pred, batch, Q, T)
    assert jnp.allclose(loss, ref_loss, atol=1e-5, rtol=1e-5), (loss, ref_loss)
    assert jnp.allclose(prediction, ref_pred, atol=1e-6), "prediction mismatch"
    assert jnp.allclose(ground_truth, ref_gt, atol=1e-6), "ground_truth mismatch"

    # Case 2: B not a multiple of the student block -> multi-block grid with ragged tail.
    B2, T2, Q2 = 10, 8, 16
    pred2, batch2 = _make_case(k_b, B2, T2, Q2, answer_prob=0.7)
    loss2, prediction2, ground_truth2 = jax.block_until_ready(
        dkt_loss(pred2, batch2, Q2, T2, max_block_students=8))
    ref_loss2, ref_pred2, ref_gt2 = _reference(pred2, batch2, Q2, T2)
    assert jnp.allclose(loss2, ref_loss2, atol=1e-5, rtol=1e-5), (loss2, ref_loss2)
    assert jnp.allclose(prediction2, ref_pred2, atol=1e-6), "prediction mismatch (case 2)"
    assert jnp.allclose(ground_truth2, ref_gt2, atol=1e-6), "ground_truth mismatch (case 2)"

    print("KERNEL_OK")
</pallas_src>

<mosaic_0001>
module attributes {stable_mosaic.version = 11 : i64} {
  func.func @_dkt_loss_kernel(%arg0: i32, %arg1: memref<8x8x16xf32, #tpu.memory_space<vmem>>, %arg2: memref<8x8x32xf32, #tpu.memory_space<vmem>>, %arg3: memref<8x1xf32, #tpu.memory_space<vmem>>, %arg4: memref<8x7xf32, #tpu.memory_space<vmem>>, %arg5: memref<8x7xf32, #tpu.memory_space<vmem>>) attributes {dimension_semantics = [#tpu.dimension_semantics<parallel>], iteration_bounds = array<i64: 1>, scalar_prefetch = 0 : i64, scratch_operands = 0 : i64, tpu.core_type = #tpu.core_type<tc>, window_params = [{transform_indices = @transform_0, window_bounds = array<i64: 8, 8, 16>}, {transform_indices = @transform_1, window_bounds = array<i64: 8, 8, 32>}, {transform_indices = @transform_2, window_bounds = array<i64: 8, 1>}, {transform_indices = @transform_3, window_bounds = array<i64: 8, 7>}, {transform_indices = @transform_4, window_bounds = array<i64: 8, 7>}]} {
    %c0 = arith.constant 0 : index
    %c0_0 = arith.constant 0 : index
    %c0_1 = arith.constant 0 : index
    %0 = vector.load %arg1[%c0, %c0_0, %c0_1] : memref<8x8x16xf32, #tpu.memory_space<vmem>>, vector<8x8x16xf32>
    %c0_2 = arith.constant 0 : index
    %c0_3 = arith.constant 0 : index
    %c0_4 = arith.constant 0 : index
    %1 = vector.load %arg2[%c0_2, %c0_3, %c0_4] : memref<8x8x32xf32, #tpu.memory_space<vmem>>, vector<8x8x32xf32>
    %2 = vector.extract_strided_slice %1 {offsets = [0, 0, 0], sizes = [8, 8, 16], strides = [1, 1, 1]} : vector<8x8x32xf32> to vector<8x8x16xf32>
    %3 = vector.extract_strided_slice %1 {offsets = [0, 0, 16], sizes = [8, 8, 16], strides = [1, 1, 1]} : vector<8x8x32xf32> to vector<8x8x16xf32>
    %4 = vector.extract_strided_slice %2 {offsets = [0, 1, 0], sizes = [8, 7, 16], strides = [1, 1, 1]} : vector<8x8x16xf32> to vector<8x7x16xf32>
    %5 = vector.extract_strided_slice %3 {offsets = [0, 1, 0], sizes = [8, 7, 16], strides = [1, 1, 1]} : vector<8x8x16xf32> to vector<8x7x16xf32>
    %6 = arith.addf %4, %5 : vector<8x7x16xf32>
    %7 = vector.extract_strided_slice %0 {offsets = [0, 0, 0], sizes = [8, 7, 16], strides = [1, 1, 1]} : vector<8x8x16xf32> to vector<8x7x16xf32>
    %8 = arith.mulf %7, %6 : vector<8x7x16xf32>
    %cst = arith.constant dense<0.000000e+00> : vector<8x7xf32>
    %9 = vector.multi_reduction <add>, %8, %cst [2] : vector<8x7x16xf32> to vector<8x7xf32>
    %10 = arith.subf %2, %3 : vector<8x8x16xf32>
    %cst_5 = arith.constant dense<0.000000e+00> : vector<8x8xf32>
    %11 = vector.multi_reduction <add>, %10, %cst_5 [2] : vector<8x8x16xf32> to vector<8x8xf32>
    %12 = vector.extract_strided_slice %11 {offsets = [0, 1], sizes = [8, 7], strides = [1, 1]} : vector<8x8xf32> to vector<8x7xf32>
    %cst_6 = arith.constant 1.000000e+00 : f32
    %13 = vector.broadcast %cst_6 : f32 to vector<8x7xf32>
    %14 = arith.addf %12, %13 : vector<8x7xf32>
    %cst_7 = arith.constant 5.000000e-01 : f32
    %15 = vector.broadcast %cst_7 : f32 to vector<8x7xf32>
    %16 = arith.mulf %14, %15 : vector<8x7xf32>
    %17 = math.floor %16 : vector<8x7xf32>
    %18 = tpu.iota {dimensions = array<i32: 1>} : vector<8x7xi32>
    %cst_8 = arith.constant 0.000000e+00 : f32
    %19 = vector.broadcast %cst_8 : f32 to vector<8x7xf32>
    %20 = arith.cmpf ogt, %9, %19 : vector<8x7xf32>
    %21 = arith.extui %20 : vector<8x7xi1> to vector<8x7xi32>
    %cst_9 = arith.constant dense<-2147483648> : vector<8xi32>
    %22 = vector.multi_reduction <maxsi>, %21, %cst_9 [1] : vector<8x7xi32> to vector<8xi32>
    %23 = vector.shape_cast %22 : vector<8xi32> to vector<8x1xi32>
    %c0_i32 = arith.constant 0 : i32
    %24 = vector.broadcast %c0_i32 : i32 to vector<8x1xi32>
    %25 = arith.cmpi sgt, %23, %24 : vector<8x1xi32>
    %c8_i32 = arith.constant 8 : i32
    %26 = vector.broadcast %c8_i32 : i32 to vector<8x7xi32>
    %27 = arith.select %20, %18, %26 : vector<8x7xi1>, vector<8x7xi32>
    %cst_10 = arith.constant dense<2147483647> : vector<8xi32>
    %28 = vector.multi_reduction <minsi>, %27, %cst_10 [1] : vector<8x7xi32> to vector<8xi32>
    %29 = vector.shape_cast %28 : vector<8xi32> to vector<8x1xi32>
    %c0_i32_11 = arith.constant 0 : i32
    %30 = vector.broadcast %c0_i32_11 : i32 to vector<8x1xi32>
    %31 = arith.select %25, %29, %30 : vector<8x1xi1>, vector<8x1xi32>
    %32 = vector.broadcast %31 : vector<8x1xi32> to vector<8x7xi32>
    %33 = arith.cmpi sge, %18, %32 : vector<8x7xi32>
    %34 = arith.extui %33 : vector<8x7xi1> to vector<8x7xi32>
    %35 = arith.sitofp %34 : vector<8x7xi32> to vector<8x7xf32>
    %cst_12 = arith.constant 0.000000e+00 : f32
    %36 = vector.broadcast %cst_12 : f32 to vector<8x7xf32>
    %37 = arith.cmpf ogt, %35, %36 : vector<8x7xf32>
    %cst_13 = arith.constant 5.000000e-01 : f32
    %38 = vector.broadcast %cst_13 : f32 to vector<8x7xf32>
    %39 = arith.select %37, %9, %38 : vector<8x7xi1>, vector<8x7xf32>
    %cst_14 = arith.constant 0.000000e+00 : f32
    %40 = vector.broadcast %cst_14 : f32 to vector<8x7xf32>
    %41 = arith.cmpf ogt, %39, %40 : vector<8x7xf32>
    %42 = math.log %39 : vector<8x7xf32>
    %cst_15 = arith.constant -1.000000e+02 : f32
    %43 = vector.broadcast %cst_15 : f32 to vector<8x7xf32>
    %44 = arith.maximumf %42, %43 : vector<8x7xf32>
    %cst_16 = arith.constant -1.000000e+02 : f32
    %45 = vector.broadcast %cst_16 : f32 to vector<8x7xf32>
    %46 = arith.select %41, %44, %45 : vector<8x7xi1>, vector<8x7xf32>
    %cst_17 = arith.constant 1.000000e+00 : f32
    %47 = vector.broadcast %cst_17 : f32 to vector<8x7xf32>
    %48 = arith.cmpf olt, %39, %47 : vector<8x7xf32>
    %cst_18 = arith.constant 1.000000e+00 : f32
    %49 = vector.broadcast %cst_18 : f32 to vector<8x7xf32>
    %50 = arith.subf %49, %39 : vector<8x7xf32>
    %51 = math.log %50 : vector<8x7xf32>
    %cst_19 = arith.constant -1.000000e+02 : f32
    %52 = vector.broadcast %cst_19 : f32 to vector<8x7xf32>
    %53 = arith.maximumf %51, %52 : vector<8x7xf32>
    %cst_20 = arith.constant -1.000000e+02 : f32
    %54 = vector.broadcast %cst_20 : f32 to vector<8x7xf32>
    %55 = arith.select %48, %53, %54 : vector<8x7xi1>, vector<8x7xf32>
    %56 = arith.mulf %17, %46 : vector<8x7xf32>
    %cst_21 = arith.constant 1.000000e+00 : f32
    %57 = vector.broadcast %cst_21 : f32 to vector<8x7xf32>
    %58 = arith.subf %57, %17 : vector<8x7xf32>
    %59 = arith.mulf %58, %55 : vector<8x7xf32>
    %60 = arith.addf %56, %59 : vector<8x7xf32>
    %cst_22 = arith.constant 0.000000e+00 : f32
    %61 = vector.broadcast %cst_22 : f32 to vector<8x7xf32>
    %62 = arith.subf %61, %60 : vector<8x7xf32>
    %63 = arith.mulf %62, %35 : vector<8x7xf32>
    %cst_23 = arith.constant dense<0.000000e+00> : vector<8xf32>
    %64 = vector.multi_reduction <add>, %63, %cst_23 [1] : vector<8x7xf32> to vector<8xf32>
    %65 = vector.shape_cast %64 : vector<8xf32> to vector<8x1xf32>
    %cst_24 = arith.constant dense<0.000000e+00> : vector<8xf32>
    %66 = vector.multi_reduction <add>, %35, %cst_24 [1] : vector<8x7xf32> to vector<8xf32>
    %67 = vector.shape_cast %66 : vector<8xf32> to vector<8x1xf32>
    %68 = arith.divf %65, %67 : vector<8x1xf32>
    %c0_25 = arith.constant 0 : index
    %c0_26 = arith.constant 0 : index
    %69 = vector.load %arg3[%c0_25, %c0_26] : memref<8x1xf32, #tpu.memory_space<vmem>>, vector<8x1xf32>
    tpu.vector_store %arg3[%c0_25, %c0_26], %68 {strides = array<i32>} : memref<8x1xf32, #tpu.memory_space<vmem>>, vector<8x1xf32>,
    %c0_27 = arith.constant 0 : index
    %c0_28 = arith.constant 0 : index
    %70 = vector.load %arg4[%c0_27, %c0_28] : memref<8x7xf32, #tpu.memory_space<vmem>>, vector<8x7xf32>
    tpu.vector_store %arg4[%c0_27, %c0_28], %9 {strides = array<i32>} : memref<8x7xf32, #tpu.memory_space<vmem>>, vector<8x7xf32>,
    %c0_29 = arith.constant 0 : index
    %c0_30 = arith.constant 0 : index
    %71 = vector.load %arg5[%c0_29, %c0_30] : memref<8x7xf32, #tpu.memory_space<vmem>>, vector<8x7xf32>
    tpu.vector_store %arg5[%c0_29, %c0_30], %17 {strides = array<i32>} : memref<8x7xf32, #tpu.memory_space<vmem>>, vector<8x7xf32>,
    return
  }
  func.func @transform_0(%arg0: i32) -> (i32, i32, i32) {
    %c0_i32 = arith.constant 0 : i32
    %c0_i32_0 = arith.constant 0 : i32
    %c0_i32_1 = arith.constant 0 : i32
    return %arg0, %c0_i32, %c0_i32_0 : i32, i32, i32
  }
  func.func @transform_1(%arg0: i32) -> (i32, i32, i32) {
    %c0_i32 = arith.constant 0 : i32
    %c0_i32_0 = arith.constant 0 : i32
    %c0_i32_1 = arith.constant 0 : i32
    return %arg0, %c0_i32, %c0_i32_0 : i32, i32, i32
  }
  func.func @transform_2(%arg0: i32) -> (i32, i32) {
    %c0_i32 = arith.constant 0 : i32
    %c0_i32_0 = arith.constant 0 : i32
    return %arg0, %c0_i32 : i32, i32
  }
  func.func @transform_3(%arg0: i32) -> (i32, i32) {
    %c0_i32 = arith.constant 0 : i32
    %c0_i32_0 = arith.constant 0 : i32
    return %arg0, %c0_i32 : i32, i32
  }
  func.func @transform_4(%arg0: i32) -> (i32, i32) {
    %c0_i32 = arith.constant 0 : i32
    %c0_i32_0 = arith.constant 0 : i32
    return %arg0, %c0_i32 : i32, i32
  }
}

</mosaic_0001>

<llo_original>
// kernel: tpu_custom_call.1
$region0: #{tpu_custom_call.1}
  #allocation0 [shape = 'u32[]', space=smem, size = 0x4, offset = 0x4, fixed_abs, tag = 'smem constant byte address 0x4 - core index']
  #allocation1 [shape = 'u32[144,128]{1,0:T(1,128)}', space=vmem, size = 0x12000, scoped, tag = 'internal scratch']
  %s0 = inlined_call_operand.hbm [shape: f32[2,8,16], index: 0, kind: input, shape index: {}]
  %s1 = inlined_call_operand.hbm [shape: f32[2,8,32], index: 1, kind: input, shape index: {}]
  %s2 = inlined_call_operand.vmem [shape: f32[2,1], index: 2, kind: output, shape index: {0}]
  %s3 = inlined_call_operand.hbm [shape: f32[2,7], index: 3, kind: output, shape index: {1}]
  %s4 = inlined_call_operand.hbm [shape: f32[2,7], index: 4, kind: output, shape index: {2}]
  %5 = xla_tuple %s2, %s3, %s4
  %s6 = sld [smem:[#allocation0]]
  $region72: #{tpu_custom_call.1} parent=0
    _
  %s8 = ssub.s32 1, %s6
  %s9 = scalar_select 0, %s8, %s6
  $region1: #{tpu_custom_call.1} parent=0
    #allocation2 [shape = 'u8[32768]{0}', space=vmem, size = 0x8000, scoped, tag = 'input window, operand 0, single buffered']
    #allocation3 [shape = 's32[1]{0}', space=sflag, size = 0x4, scoped, tag = 'scoped memory for tpu_custom_call.1']
    #allocation4 [shape = 's32[1]{0}', space=sflag, size = 0x4, scoped, tag = 'scoped memory for tpu_custom_call.1']
    #allocation5 [shape = 'u8[32768]{0}', space=vmem, size = 0x8000, scoped, tag = 'input window, operand 1, single buffered']
    #allocation6 [shape = 's32[1]{0}', space=sflag, size = 0x4, scoped, tag = 'scoped memory for tpu_custom_call.1']
    #allocation7 [shape = 'u8[4096]{0}', space=vmem, size = 0x1000, scoped, tag = 'output window, operand 0, single buffered']
    #allocation8 [shape = 'u8[4096]{0}', space=vmem, size = 0x1000, scoped, tag = 'output window, operand 1, single buffered']
    #allocation9 [shape = 'u8[4096]{0}', space=vmem, size = 0x1000, scoped, tag = 'output window, operand 2, single buffered']
    #allocation10 [shape = 's32[1]{0}', space=sflag, size = 0x4, scoped, tag = 'scoped memory for tpu_custom_call.1']
    %10 = vsyncpa [#allocation3], 0
    %11 = vsyncpa [#allocation6], 0
    %12 = vsyncpa [#allocation4], 0
    %13 = vsyncpa [#allocation10], 0
    // Predicated region
    $region2: #{tpu_custom_call.1} parent=1 // pred_check
      _
    $region3: #{tpu_custom_call.1} parent=1 // pred_check_branch
      %15 = sbr.rel (0) target = $region5
    $region4: #{tpu_custom_call.1} parent=1 // pred_region
      %s17 = ssub.s32 1024, 256
      %18 = vsyncadd [#allocation3], %s17
      %s19 = sshll.u32 [#allocation2], 4
      %s20 = int_to_ptr.vmem [resolvable:$true] %s19
      %25 = dma.hbm_to_vmem [thread:$0]  %s0, 256, %s20, [#allocation3], 128, 128, 8
    $region5: #{tpu_custom_call.1} parent=1 // pred_fallthru
      _
    // Predicated region
    $region6: #{tpu_custom_call.1} parent=1 // pred_check
      _
    $region7: #{tpu_custom_call.1} parent=1 // pred_check_branch
      %27 = sbr.rel (0) target = $region9
    $region8: #{tpu_custom_call.1} parent=1 // pred_region
      %s29 = ssub.s32 1024, 256
      %30 = vsyncadd [#allocation6], %s29
      %s31 = sshll.u32 [#allocation5], 4
      %s32 = int_to_ptr.vmem [resolvable:$true] %s31
      %37 = dma.hbm_to_vmem [thread:$0]  %s1, 256, %s32, [#allocation6], 128, 128, 8
    $region9: #{tpu_custom_call.1} parent=1 // pred_fallthru
      _
    // Predicated region
    $region10: #{tpu_custom_call.1} parent=1 // pred_check
      _
    $region11: #{tpu_custom_call.1} parent=1 // pred_check_branch
      %39 = sbr.rel (0) target = $region13
    $region12: #{tpu_custom_call.1} parent=1 // pred_region
      %40 = dma.done [#allocation3], 1024
    $region13: #{tpu_custom_call.1} parent=1 // pred_fallthru
      _
    // Predicated region
    $region14: #{tpu_custom_call.1} parent=1 // pred_check
      _
    $region15: #{tpu_custom_call.1} parent=1 // pred_check_branch
      %42 = sbr.rel (0) target = $region17
    $region16: #{tpu_custom_call.1} parent=1 // pred_region
      %43 = dma.done [#allocation6], 1024
    $region17: #{tpu_custom_call.1} parent=1 // pred_fallthru
      _
    %v44 = vld [vmem:[#allocation2] sm:$0xff]
    %v45 = vld [vmem:[#allocation2 + $0x8] sm:$0xff]
    %v46 = vld [vmem:[#allocation2 + $0x10] sm:$0xff]
    %v47 = vld [vmem:[#allocation2 + $0x18] sm:$0xff]
    %v48 = vld [vmem:[#allocation2 + $0x20] sm:$0xff]
    %v49 = vld [vmem:[#allocation2 + $0x28] sm:$0xff]
    %v50 = vld [vmem:[#allocation2 + $0x30] sm:$0xff]
    %v51 = vld [vmem:[#allocation2 + $0x38] sm:$0xff]
    %v52 = vld [vmem:[#allocation5] sm:$0xff]
    %v53 = vld [vmem:[#allocation5 + $0x8] sm:$0xff]
    %v54 = vld [vmem:[#allocation5 + $0x10] sm:$0xff]
    %v55 = vld [vmem:[#allocation5 + $0x18] sm:$0xff]
    %v56 = vld [vmem:[#allocation5 + $0x20] sm:$0xff]
    %v57 = vld [vmem:[#allocation5 + $0x28] sm:$0xff]
    %v58 = vld [vmem:[#allocation5 + $0x30] sm:$0xff]
    %v59 = vld [vmem:[#allocation5 + $0x38] sm:$0xff]
    %68 = vrot.lane.b32.xlu0 %v52, 112
    %v69 = vpop.permute.xlu0 %68
    %70 = vrot.lane.b32.xlu0 %v53, 112
    %v71 = vpop.permute.xlu0 %70
    %72 = vrot.lane.b32.xlu0 %v54, 112
    %v73 = vpop.permute.xlu0 %72
    %74 = vrot.lane.b32.xlu0 %v55, 112
    %v75 = vpop.permute.xlu0 %74
    %76 = vrot.lane.b32.xlu0 %v56, 112
    %v77 = vpop.permute.xlu0 %76
    %78 = vrot.lane.b32.xlu0 %v57, 112
    %v79 = vpop.permute.xlu0 %78
    %80 = vrot.lane.b32.xlu0 %v58, 112
    %v81 = vpop.permute.xlu0 %80
    %82 = vrot.lane.b32.xlu0 %v59, 112
    %v83 = vpop.permute.xlu0 %82
    %v92 = vadd.f32 %v52, %v69
    %v93 = vadd.f32 %v53, %v71
    %v94 = vadd.f32 %v54, %v73
    %v95 = vadd.f32 %v55, %v75
    %v96 = vadd.f32 %v56, %v77
    %v97 = vadd.f32 %v57, %v79
    %v98 = vadd.f32 %v58, %v81
    %v99 = vadd.f32 %v59, %v83
    %v108 = vrot.slane %v92, 1
    %v109 = vrot.slane %v93, 1
    %v110 = vrot.slane %v94, 1
    %v111 = vrot.slane %v95, 1
    %v112 = vrot.slane %v96, 1
    %v113 = vrot.slane %v97, 1
    %v114 = vrot.slane %v98, 1
    %v115 = vrot.slane %v99, 1
    %v124 = vmul.f32 %v44, %v108
    %v125 = vmul.f32 %v45, %v109
    %v126 = vmul.f32 %v46, %v110
    %v127 = vmul.f32 %v47, %v111
    %v128 = vmul.f32 %v48, %v112
    %v129 = vmul.f32 %v49, %v113
    %v130 = vmul.f32 %v50, %v114
    %v131 = vmul.f32 %v51, %v115
    %vm132 = vcmask 129024
    %v133 = vsel %vm132, %v124, 0.0
    %134 = vadd.xlane.f32.xlu0 %v133
    %v135 = vpop.xlane.xlu0 %134
    %v136 = vsel %vm132, %v125, 0.0
    %137 = vadd.xlane.f32.xlu0 %v136
    %v138 = vpop.xlane.xlu0 %137
    %v139 = vsel %vm132, %v126, 0.0
    %140 = vadd.xlane.f32.xlu0 %v139
    %v141 = vpop.xlane.xlu0 %140
    %v142 = vsel %vm132, %v127, 0.0
    %143 = vadd.xlane.f32.xlu0 %v142
    %v144 = vpop.xlane.xlu0 %143
    %v145 = vsel %vm132, %v128, 0.0
    %146 = vadd.xlane.f32.xlu0 %v145
    %v147 = vpop.xlane.xlu0 %146
    %v148 = vsel %vm132, %v129, 0.0
    %149 = vadd.xlane.f32.xlu0 %v148
    %v150 = vpop.xlane.xlu0 %149
    %v151 = vsel %vm132, %v130, 0.0
    %152 = vadd.xlane.f32.xlu0 %v151
    %v153 = vpop.xlane.xlu0 %152
    %v154 = vsel %vm132, %v131, 0.0
    %155 = vadd.xlane.f32.xlu0 %v154
    %v156 = vpop.xlane.xlu0 %155
    %v157 = vsub.f32 %v52, %v69
    %v158 = vsub.f32 %v53, %v71
    %v159 = vsub.f32 %v54, %v73
    %v160 = vsub.f32 %v55, %v75
    %v161 = vsub.f32 %v56, %v77
    %v162 = vsub.f32 %v57, %v79
    %v163 = vsub.f32 %v58, %v81
    %v164 = vsub.f32 %v59, %v83
    %vm165 = vcmask 130048
    %v166 = vsel %vm165, %v157, 0.0
    %167 = vadd.xlane.f32.xlu0 %v166
    %v168 = vpop.xlane.xlu0 %167
    %v169 = vsel %vm165, %v158, 0.0
    %170 = vadd.xlane.f32.xlu0 %v169
    %v171 = vpop.xlane.xlu0 %170
    %v172 = vsel %vm165, %v159, 0.0
    %173 = vadd.xlane.f32.xlu0 %v172
    %v174 = vpop.xlane.xlu0 %173
    %v175 = vsel %vm165, %v160, 0.0
    %176 = vadd.xlane.f32.xlu0 %v175
    %v177 = vpop.xlane.xlu0 %176
    %v178 = vsel %vm165, %v161, 0.0
    %179 = vadd.xlane.f32.xlu0 %v178
    %v180 = vpop.xlane.xlu0 %179
    %v181 = vsel %vm165, %v162, 0.0
    %182 = vadd.xlane.f32.xlu0 %v181
    %v183 = vpop.xlane.xlu0 %182
    %v184 = vsel %vm165, %v163, 0.0
    %185 = vadd.xlane.f32.xlu0 %v184
    %v186 = vpop.xlane.xlu0 %185
    %v187 = vsel %vm165, %v164, 0.0
    %188 = vadd.xlane.f32.xlu0 %v187
    %v189 = vpop.xlane.xlu0 %188
    %v190 = vadd.f32 %v168, 1.0
    %v191 = vadd.f32 %v171, 1.0
    %v192 = vadd.f32 %v174, 1.0
    %v193 = vadd.f32 %v177, 1.0
    %v194 = vadd.f32 %v180, 1.0
    %v195 = vadd.f32 %v183, 1.0
    %v196 = vadd.f32 %v186, 1.0
    %v197 = vadd.f32 %v189, 1.0
    %v198 = vmul.f32 %v190, 0.5
    %v199 = vmul.f32 %v191, 0.5
    %v200 = vmul.f32 %v192, 0.5
    %v201 = vmul.f32 %v193, 0.5
    %v202 = vmul.f32 %v194, 0.5
    %v203 = vmul.f32 %v195, 0.5
    %v204 = vmul.f32 %v196, 0.5
    %v205 = vmul.f32 %v197, 0.5
    %v206 = vfloor.f32 %v198
    %v207 = vfloor.f32 %v199
    %v208 = vfloor.f32 %v200
    %v209 = vfloor.f32 %v201
    %v210 = vfloor.f32 %v202
    %v211 = vfloor.f32 %v203
    %v212 = vfloor.f32 %v204
    %v213 = vfloor.f32 %v205
    %v214 = vlaneseq
    %v215 = vand.u32 %v214, 127
    %vm216 = vcmp.gt.f32.partialorder %v135, 0.0
    %vm217 = vcmp.gt.f32.partialorder %v138, 0.0
    %vm218 = vcmp.gt.f32.partialorder %v141, 0.0
    %vm219 = vcmp.gt.f32.partialorder %v144, 0.0
    %vm220 = vcmp.gt.f32.partialorder %v147, 0.0
    %vm221 = vcmp.gt.f32.partialorder %v150, 0.0
    %vm222 = vcmp.gt.f32.partialorder %v153, 0.0
    %vm223 = vcmp.gt.f32.partialorder %v156, 0.0
    %v224 = vsel %vm216, 1, 0
    %v225 = vsel %vm217, 1, 0
    %v226 = vsel %vm218, 1, 0
    %v227 = vsel %vm219, 1, 0
    %v228 = vsel %vm220, 1, 0
    %v229 = vsel %vm221, 1, 0
    %v230 = vsel %vm222, 1, 0
    %v231 = vsel %vm223, 1, 0
    %v232 = vlaneseq
    %v233 = vshrl.u32 %v232, 7
    %v234 = vsub.s32 %v215, %v233
    %v235 = vrot.slane %v224, %v234
    %v236 = vlaneseq
    %v237 = vshrl.u32 %v236, 7
    %v238 = vsub.s32 %v215, %v237
    %v239 = vrot.slane %v225, %v238
    %v240 = vlaneseq
    %v241 = vshrl.u32 %v240, 7
    %v242 = vsub.s32 %v215, %v241
    %v243 = vrot.slane %v226, %v242
    %v244 = vlaneseq
    %v245 = vshrl.u32 %v244, 7
    %v246 = vsub.s32 %v215, %v245
    %v247 = vrot.slane %v227, %v246
    %v248 = vlaneseq
    %v249 = vshrl.u32 %v248, 7
    %v250 = vsub.s32 %v215, %v249
    %v251 = vrot.slane %v228, %v250
    %v252 = vlaneseq
    %v253 = vshrl.u32 %v252, 7
    %v254 = vsub.s32 %v215, %v253
    %v255 = vrot.slane %v229, %v254
    %v256 = vlaneseq
    %v257 = vshrl.u32 %v256, 7
    %v258 = vsub.s32 %v215, %v257
    %v259 = vrot.slane %v230, %v258
    %v260 = vlaneseq
    %v261 = vshrl.u32 %v260, 7
    %v262 = vsub.s32 %v215, %v261
    %v263 = vrot.slane %v231, %v262
    %vm264 = vcmask 1041409
    %v265 = vsel %vm264, %v239, %v235
    %vm266 = vcmask 1042434
    %v267 = vsel %vm266, %v243, %v265
    %vm268 = vcmask 1043459
    %v269 = vsel %vm268, %v247, %v267
    %vm270 = vcmask 1044484
    %v271 = vsel %vm270, %v251, %v269
    %vm272 = vcmask 1045509
    %v273 = vsel %vm272, %v255, %v271
    %vm274 = vcmask 1046534
    %v275 = vsel %vm274, %v259, %v273
    %vm276 = vcmask 1047559
    %v277 = vsel %vm276, %v263, %v275
    %vm278 = vcmask 56320
    %v279 = vsel %vm278, %v277, 2147483648
    %v280 = vand.u32 %v279, 65535
    %v281 = vshra.s32 %v279, 16
    %v282 = vcvt.s32.f32 %v280
    %v283 = vcvt.s32.f32 %v281
    %284 = vmax.xlane.f32.xlu0 %v283
    %v285 = vpop.xlane.xlu0 %284
    %vm286 = vcmp.eq.f32.partialorder %v283, %v285
    %v287 = vsel %vm286, %v282, -inf
    %288 = vmax.xlane.f32.xlu0 %v287
    %v289 = vpop.xlane.xlu0 %288
    %v290 = vcvt.f32.s32 %v289
    %v291 = vcvt.f32.s32 %v285
    %v292 = vshll.u32 %v291, 16
    %v293 = vadd.s32 %v292, %v290
    %vm294 = vcmp.gt.s32.totalorder %v293, 0
    %296 = vbcast.lane.b32.xlu0 %v215, 256
    %v297 = vpop.permute.xlu0 %296
    %v298 = vsel %vm216, %v297, 8
    %v299 = vsel %vm217, %v297, 8
    %v300 = vsel %vm218, %v297, 8
    %v301 = vsel %vm219, %v297, 8
    %v302 = vsel %vm220, %v297, 8
    %v303 = vsel %vm221, %v297, 8
    %v304 = vsel %vm222, %v297, 8
    %v305 = vsel %vm223, %v297, 8
    %306 = vset.pattern.permute.xlu0 0
    %307 = vperm.xlu0 %306, %v298
    %v308 = vpop.permute.xlu0 %307
    %309 = vset.pattern.permute.xlu0 0
    %310 = vperm.xlu0 %309, %v299
    %v311 = vpop.permute.xlu0 %310
    %312 = vset.pattern.permute.xlu0 0
    %313 = vperm.xlu0 %312, %v300
    %v314 = vpop.permute.xlu0 %313
    %315 = vset.pattern.permute.xlu0 0
    %316 = vperm.xlu0 %315, %v301
    %v317 = vpop.permute.xlu0 %316
    %318 = vset.pattern.permute.xlu0 0
    %319 = vperm.xlu0 %318, %v302
    %v320 = vpop.permute.xlu0 %319
    %321 = vset.pattern.permute.xlu0 0
    %322 = vperm.xlu0 %321, %v303
    %v323 = vpop.permute.xlu0 %322
    %324 = vset.pattern.permute.xlu0 0
    %325 = vperm.xlu0 %324, %v304
    %v326 = vpop.permute.xlu0 %325
    %327 = vset.pattern.permute.xlu0 0
    %328 = vperm.xlu0 %327, %v305
    %v329 = vpop.permute.xlu0 %328
    %v330 = vlaneseq
    %v331 = vshrl.u32 %v330, 7
    %v332 = vsub.s32 %v215, %v331
    %v333 = vrot.slane %v308, %v332
    %v334 = vlaneseq
    %v335 = vshrl.u32 %v334, 7
    %v336 = vsub.s32 %v215, %v335
    %v337 = vrot.slane %v311, %v336
    %v338 = vlaneseq
    %v339 = vshrl.u32 %v338, 7
    %v340 = vsub.s32 %v215, %v339
    %v341 = vrot.slane %v314, %v340
    %v342 = vlaneseq
    %v343 = vshrl.u32 %v342, 7
    %v344 = vsub.s32 %v215, %v343
    %v345 = vrot.slane %v317, %v344
    %v346 = vlaneseq
    %v347 = vshrl.u32 %v346, 7
    %v348 = vsub.s32 %v215, %v347
    %v349 = vrot.slane %v320, %v348
    %v350 = vlaneseq
    %v351 = vshrl.u32 %v350, 7
    %v352 = vsub.s32 %v215, %v351
    %v353 = vrot.slane %v323, %v352
    %v354 = vlaneseq
    %v355 = vshrl.u32 %v354, 7
    %v356 = vsub.s32 %v215, %v355
    %v357 = vrot.slane %v326, %v356
    %v358 = vlaneseq
    %v359 = vshrl.u32 %v358, 7
    %v360 = vsub.s32 %v215, %v359
    %v361 = vrot.slane %v329, %v360
    %v362 = vsel %vm264, %v337, %v333
    %v363 = vsel %vm266, %v341, %v362
    %v364 = vsel %vm268, %v345, %v363
    %v365 = vsel %vm270, %v349, %v364
    %v366 = vsel %vm272, %v353, %v365
    %v367 = vsel %vm274, %v357, %v366
    %v368 = vsel %vm276, %v361, %v367
    %v369 = vsel %vm278, %v368, 2147483647
    %v370 = vand.u32 %v369, 65535
    %v371 = vshra.s32 %v369, 16
    %v372 = vcvt.s32.f32 %v370
    %v373 = vcvt.s32.f32 %v371
    %374 = vmin.xlane.f32.xlu0 %v373
    %v375 = vpop.xlane.xlu0 %374
    %vm376 = vcmp.eq.f32.partialorder %v373, %v375
    %v377 = vsel %vm376, %v372, inf
    %378 = vmin.xlane.f32.xlu0 %v377
    %v379 = vpop.xlane.xlu0 %378
    %v380 = vcvt.f32.s32 %v379
    %v381 = vcvt.f32.s32 %v375
    %v382 = vshll.u32 %v381, 16
    %v383 = vadd.s32 %v382, %v380
    %v384 = vsel %vm294, %v383, 0
    %vm385 = vcmp.ge.s32.totalorder %v215, %v384
    %v386 = vsel %vm385, 1, 0
    %v387 = vcvt.s32.f32 %v386
    %vm388 = vcmp.gt.f32.partialorder %v387, 0.0
    %v397 = vlaneseq
    %v398 = vshrl.u32 %v397, 7
    %v399 = vsub.s32 %v215, %v398
    %v400 = vrot.slane %v135, %v399
    %v401 = vlaneseq
    %v402 = vshrl.u32 %v401, 7
    %v403 = vsub.s32 %v215, %v402
    %v404 = vrot.slane %v138, %v403
    %v405 = vlaneseq
    %v406 = vshrl.u32 %v405, 7
    %v407 = vsub.s32 %v215, %v406
    %v408 = vrot.slane %v141, %v407
    %v409 = vlaneseq
    %v410 = vshrl.u32 %v409, 7
    %v411 = vsub.s32 %v215, %v410
    %v412 = vrot.slane %v144, %v411
    %v413 = vlaneseq
    %v414 = vshrl.u32 %v413, 7
    %v415 = vsub.s32 %v215, %v414
    %v416 = vrot.slane %v147, %v415
    %v417 = vlaneseq
    %v418 = vshrl.u32 %v417, 7
    %v419 = vsub.s32 %v215, %v418
    %v420 = vrot.slane %v150, %v419
    %v421 = vlaneseq
    %v422 = vshrl.u32 %v421, 7
    %v423 = vsub.s32 %v215, %v422
    %v424 = vrot.slane %v153, %v423
    %v425 = vlaneseq
    %v426 = vshrl.u32 %v425, 7
    %v427 = vsub.s32 %v215, %v426
    %v428 = vrot.slane %v156, %v427
    %v429 = vsel %vm264, %v404, %v400
    %v430 = vsel %vm266, %v408, %v429
    %v431 = vsel %vm268, %v412, %v430
    %v432 = vsel %vm270, %v416, %v431
    %v433 = vsel %vm272, %v420, %v432
    %v434 = vsel %vm274, %v424, %v433
    %v435 = vsel %vm276, %v428, %v434
    %v437 = vsel %vm388, %v435, 0.5
    %vm438 = vcmp.gt.f32.partialorder %v437, 0.0
    %v439 = vlog2.pop %v437
    %v440 = vmul.f32 %v439, 0.6931472
    %v441 = vmax.f32 %v440, -100.0
    %v442 = vsel %vm438, %v441, -100.0
    %vm443 = vcmp.lt.f32.partialorder %v437, 1.0
    %v444 = vsub.f32 1.0, %v437
    %v445 = vlog2.pop %v444
    %v446 = vmul.f32 %v445, 0.6931472
    %v447 = vmax.f32 %v446, -100.0
    %v448 = vsel %vm443, %v447, -100.0
    %v450 = vlaneseq
    %v451 = vshrl.u32 %v450, 7
    %v452 = vsub.s32 0, %v451
    %v453 = vrot.slane %v442, %v452
    %s455 = sor.u32 256, 255
    %456 = vbcast.lane.b32.xlu0 %v453, %s455
    %v457 = vpop.permute.xlu0 %456
    %v458 = vlaneseq
    %v459 = vshrl.u32 %v458, 7
    %v460 = vsub.s32 1, %v459
    %v461 = vrot.slane %v442, %v460
    %s463 = sor.u32 256, 255
    %464 = vbcast.lane.b32.xlu0 %v461, %s463
    %v465 = vpop.permute.xlu0 %464
    %v466 = vlaneseq
    %v467 = vshrl.u32 %v466, 7
    %v468 = vsub.s32 2, %v467
    %v469 = vrot.slane %v442, %v468
    %s471 = sor.u32 256, 255
    %472 = vbcast.lane.b32.xlu0 %v469, %s471
    %v473 = vpop.permute.xlu0 %472
    %v474 = vlaneseq
    %v475 = vshrl.u32 %v474, 7
    %v476 = vsub.s32 3, %v475
    %v477 = vrot.slane %v442, %v476
    %s479 = sor.u32 256, 255
    %480 = vbcast.lane.b32.xlu0 %v477, %s479
    %v481 = vpop.permute.xlu0 %480
    %v482 = vlaneseq
    %v483 = vshrl.u32 %v482, 7
    %v484 = vsub.s32 4, %v483
    %v485 = vrot.slane %v442, %v484
    %s487 = sor.u32 256, 255
    %488 = vbcast.lane.b32.xlu0 %v485, %s487
    %v489 = vpop.permute.xlu0 %488
    %v490 = vlaneseq
    %v491 = vshrl.u32 %v490, 7
    %v492 = vsub.s32 5, %v491
    %v493 = vrot.slane %v442, %v492
    %s495 = sor.u32 256, 255
    %496 = vbcast.lane.b32.xlu0 %v493, %s495
    %v497 = vpop.permute.xlu0 %496
    %v498 = vlaneseq
    %v499 = vshrl.u32 %v498, 7
    %v500 = vsub.s32 6, %v499
    %v501 = vrot.slane %v442, %v500
    %s503 = sor.u32 256, 255
    %504 = vbcast.lane.b32.xlu0 %v501, %s503
    %v505 = vpop.permute.xlu0 %504
    %v506 = vlaneseq
    %v507 = vshrl.u32 %v506, 7
    %v508 = vsub.s32 7, %v507
    %v509 = vrot.slane %v442, %v508
    %s511 = sor.u32 256, 255
    %512 = vbcast.lane.b32.xlu0 %v509, %s511
    %v513 = vpop.permute.xlu0 %512
    %v522 = vmul.f32 %v206, %v457
    %v523 = vmul.f32 %v207, %v465
    %v524 = vmul.f32 %v208, %v473
    %v525 = vmul.f32 %v209, %v481
    %v526 = vmul.f32 %v210, %v489
    %v527 = vmul.f32 %v211, %v497
    %v528 = vmul.f32 %v212, %v505
    %v529 = vmul.f32 %v213, %v513
    %v530 = vsub.f32 1.0, %v206
    %v531 = vsub.f32 1.0, %v207
    %v532 = vsub.f32 1.0, %v208
    %v533 = vsub.f32 1.0, %v209
    %v534 = vsub.f32 1.0, %v210
    %v535 = vsub.f32 1.0, %v211
    %v536 = vsub.f32 1.0, %v212
    %v537 = vsub.f32 1.0, %v213
    %v539 = vlaneseq
    %v540 = vshrl.u32 %v539, 7
    %v541 = vsub.s32 0, %v540
    %v542 = vrot.slane %v448, %v541
    %s544 = sor.u32 256, 255
    %545 = vbcast.lane.b32.xlu0 %v542, %s544
    %v546 = vpop.permute.xlu0 %545
    %v547 = vlaneseq
    %v548 = vshrl.u32 %v547, 7
    %v549 = vsub.s32 1, %v548
    %v550 = vrot.slane %v448, %v549
    %s552 = sor.u32 256, 255
    %553 = vbcast.lane.b32.xlu0 %v550, %s552
    %v554 = vpop.permute.xlu0 %553
    %v555 = vlaneseq
    %v556 = vshrl.u32 %v555, 7
    %v557 = vsub.s32 2, %v556
    %v558 = vrot.slane %v448, %v557
    %s560 = sor.u32 256, 255
    %561 = vbcast.lane.b32.xlu0 %v558, %s560
    %v562 = vpop.permute.xlu0 %561
    %v563 = vlaneseq
    %v564 = vshrl.u32 %v563, 7
    %v565 = vsub.s32 3, %v564
    %v566 = vrot.slane %v448, %v565
    %s568 = sor.u32 256, 255
    %569 = vbcast.lane.b32.xlu0 %v566, %s568
    %v570 = vpop.permute.xlu0 %569
    %v571 = vlaneseq
    %v572 = vshrl.u32 %v571, 7
    %v573 = vsub.s32 4, %v572
    %v574 = vrot.slane %v448, %v573
    %s576 = sor.u32 256, 255
    %577 = vbcast.lane.b32.xlu0 %v574, %s576
    %v578 = vpop.permute.xlu0 %577
    %v579 = vlaneseq
    %v580 = vshrl.u32 %v579, 7
    %v581 = vsub.s32 5, %v580
    %v582 = vrot.slane %v448, %v581
    %s584 = sor.u32 256, 255
    %585 = vbcast.lane.b32.xlu0 %v582, %s584
    %v586 = vpop.permute.xlu0 %585
    %v587 = vlaneseq
    %v588 = vshrl.u32 %v587, 7
    %v589 = vsub.s32 6, %v588
    %v590 = vrot.slane %v448, %v589
    %s592 = sor.u32 256, 255
    %593 = vbcast.lane.b32.xlu0 %v590, %s592
    %v594 = vpop.permute.xlu0 %593
    %v595 = vlaneseq
    %v596 = vshrl.u32 %v595, 7
    %v597 = vsub.s32 7, %v596
    %v598 = vrot.slane %v448, %v597
    %s600 = sor.u32 256, 255
    %601 = vbcast.lane.b32.xlu0 %v598, %s600
    %v602 = vpop.permute.xlu0 %601
    %v611 = vmul.f32 %v530, %v546
    %v612 = vmul.f32 %v531, %v554
    %v613 = vmul.f32 %v532, %v562
    %v614 = vmul.f32 %v533, %v570
    %v615 = vmul.f32 %v534, %v578
    %v616 = vmul.f32 %v535, %v586
    %v617 = vmul.f32 %v536, %v594
    %v618 = vmul.f32 %v537, %v602
    %v619 = vadd.f32 %v522, %v611
    %v620 = vadd.f32 %v523, %v612
    %v621 = vadd.f32 %v524, %v613
    %v622 = vadd.f32 %v525, %v614
    %v623 = vadd.f32 %v526, %v615
    %v624 = vadd.f32 %v527, %v616
    %v625 = vadd.f32 %v528, %v617
    %v626 = vadd.f32 %v529, %v618
    %v627 = vsub.f32 0.0, %v619
    %v628 = vsub.f32 0.0, %v620
    %v629 = vsub.f32 0.0, %v621
    %v630 = vsub.f32 0.0, %v622
    %v631 = vsub.f32 0.0, %v623
    %v632 = vsub.f32 0.0, %v624
    %v633 = vsub.f32 0.0, %v625
    %v634 = vsub.f32 0.0, %v626
    %v636 = vlaneseq
    %v637 = vshrl.u32 %v636, 7
    %v638 = vsub.s32 0, %v637
    %v639 = vrot.slane %v387, %v638
    %s641 = sor.u32 256, 255
    %642 = vbcast.lane.b32.xlu0 %v639, %s641
    %v643 = vpop.permute.xlu0 %642
    %v644 = vlaneseq
    %v645 = vshrl.u32 %v644, 7
    %v646 = vsub.s32 1, %v645
    %v647 = vrot.slane %v387, %v646
    %s649 = sor.u32 256, 255
    %650 = vbcast.lane.b32.xlu0 %v647, %s649
    %v651 = vpop.permute.xlu0 %650
    %v652 = vlaneseq
    %v653 = vshrl.u32 %v652, 7
    %v654 = vsub.s32 2, %v653
    %v655 = vrot.slane %v387, %v654
    %s657 = sor.u32 256, 255
    %658 = vbcast.lane.b32.xlu0 %v655, %s657
    %v659 = vpop.permute.xlu0 %658
    %v660 = vlaneseq
    %v661 = vshrl.u32 %v660, 7
    %v662 = vsub.s32 3, %v661
    %v663 = vrot.slane %v387, %v662
    %s665 = sor.u32 256, 255
    %666 = vbcast.lane.b32.xlu0 %v663, %s665
    %v667 = vpop.permute.xlu0 %666
    %v668 = vlaneseq
    %v669 = vshrl.u32 %v668, 7
    %v670 = vsub.s32 4, %v669
    %v671 = vrot.slane %v387, %v670
    %s673 = sor.u32 256, 255
    %674 = vbcast.lane.b32.xlu0 %v671, %s673
    %v675 = vpop.permute.xlu0 %674
    %v676 = vlaneseq
    %v677 = vshrl.u32 %v676, 7
    %v678 = vsub.s32 5, %v677
    %v679 = vrot.slane %v387, %v678
    %s681 = sor.u32 256, 255
    %682 = vbcast.lane.b32.xlu0 %v679, %s681
    %v683 = vpop.permute.xlu0 %682
    %v684 = vlaneseq
    %v685 = vshrl.u32 %v684, 7
    %v686 = vsub.s32 6, %v685
    %v687 = vrot.slane %v387, %v686
    %s689 = sor.u32 256, 255
    %690 = vbcast.lane.b32.xlu0 %v687, %s689
    %v691 = vpop.permute.xlu0 %690
    %v692 = vlaneseq
    %v693 = vshrl.u32 %v692, 7
    %v694 = vsub.s32 7, %v693
    %v695 = vrot.slane %v387, %v694
    %s697 = sor.u32 256, 255
    %698 = vbcast.lane.b32.xlu0 %v695, %s697
    %v699 = vpop.permute.xlu0 %698
    %v708 = vmul.f32 %v627, %v643
    %v709 = vmul.f32 %v628, %v651
    %v710 = vmul.f32 %v629, %v659
    %v711 = vmul.f32 %v630, %v667
    %v712 = vmul.f32 %v631, %v675
    %v713 = vmul.f32 %v632, %v683
    %v714 = vmul.f32 %v633, %v691
    %v715 = vmul.f32 %v634, %v699
    %724 = vset.pattern.permute.xlu0 0
    %725 = vperm.xlu0 %724, %v708
    %v726 = vpop.permute.xlu0 %725
    %727 = vset.pattern.permute.xlu0 0
    %728 = vperm.xlu0 %727, %v709
    %v729 = vpop.permute.xlu0 %728
    %730 = vset.pattern.permute.xlu0 0
    %731 = vperm.xlu0 %730, %v710
    %v732 = vpop.permute.xlu0 %731
    %733 = vset.pattern.permute.xlu0 0
    %734 = vperm.xlu0 %733, %v711
    %v735 = vpop.permute.xlu0 %734
    %736 = vset.pattern.permute.xlu0 0
    %737 = vperm.xlu0 %736, %v712
    %v738 = vpop.permute.xlu0 %737
    %739 = vset.pattern.permute.xlu0 0
    %740 = vperm.xlu0 %739, %v713
    %v741 = vpop.permute.xlu0 %740
    %742 = vset.pattern.permute.xlu0 0
    %743 = vperm.xlu0 %742, %v714
    %v744 = vpop.permute.xlu0 %743
    %745 = vset.pattern.permute.xlu0 0
    %746 = vperm.xlu0 %745, %v715
    %v747 = vpop.permute.xlu0 %746
    %v748 = vadd.s32 %v215, 1
    %v749 = vlaneseq
    %v750 = vshrl.u32 %v749, 7
    %v751 = vsub.s32 %v748, %v750
    %v752 = vrot.slane %v726, %v751
    %v753 = vlaneseq
    %v754 = vshrl.u32 %v753, 7
    %v755 = vsub.s32 %v748, %v754
    %v756 = vrot.slane %v729, %v755
    %v757 = vlaneseq
    %v758 = vshrl.u32 %v757, 7
    %v759 = vsub.s32 %v748, %v758
    %v760 = vrot.slane %v732, %v759
    %v761 = vlaneseq
    %v762 = vshrl.u32 %v761, 7
    %v763 = vsub.s32 %v748, %v762
    %v764 = vrot.slane %v735, %v763
    %v765 = vlaneseq
    %v766 = vshrl.u32 %v765, 7
    %v767 = vsub.s32 %v748, %v766
    %v768 = vrot.slane %v738, %v767
    %v769 = vlaneseq
    %v770 = vshrl.u32 %v769, 7
    %v771 = vsub.s32 %v748, %v770
    %v772 = vrot.slane %v741, %v771
    %v773 = vlaneseq
    %v774 = vshrl.u32 %v773, 7
    %v775 = vsub.s32 %v748, %v774
    %v776 = vrot.slane %v744, %v775
    %v777 = vlaneseq
    %v778 = vshrl.u32 %v777, 7
    %v779 = vsub.s32 %v748, %v778
    %v780 = vrot.slane %v747, %v779
    %v781 = vsel %vm264, %v756, %v752
    %v782 = vsel %vm266, %v760, %v781
    %v783 = vsel %vm268, %v764, %v782
    %v784 = vsel %vm270, %v768, %v783
    %v785 = vsel %vm272, %v772, %v784
    %v786 = vsel %vm274, %v776, %v785
    %v787 = vsel %vm276, %v780, %v786
    %v789 = vsel %vm278, %v787, 0.0
    %790 = vadd.xlane.f32.xlu0 %v789
    %v791 = vpop.xlane.xlu0 %790
    %v792 = vsel %vm278, %v387, 0.0
    %793 = vadd.xlane.f32.xlu0 %v792
    %v794 = vpop.xlane.xlu0 %793
    %v795 = vrcp.pop %v794
    %v796 = vmul.f32 %v791, %v795
    %vm797 = vcmask 7168
    %798 = vst.msk [vmem:[#allocation7] sm:$0xff] %vm797, %v796
    %799 = vst.msk [vmem:[#allocation8] sm:$0xff] %vm278, %v435
    %v808 = vlaneseq
    %v809 = vshrl.u32 %v808, 7
    %v810 = vsub.s32 %v748, %v809
    %v811 = vrot.slane %v206, %v810
    %v812 = vlaneseq
    %v813 = vshrl.u32 %v812, 7
    %v814 = vsub.s32 %v748, %v813
    %v815 = vrot.slane %v207, %v814
    %v816 = vlaneseq
    %v817 = vshrl.u32 %v816, 7
    %v818 = vsub.s32 %v748, %v817
    %v819 = vrot.slane %v208, %v818
    %v820 = vlaneseq
    %v821 = vshrl.u32 %v820, 7
    %v822 = vsub.s32 %v748, %v821
    %v823 = vrot.slane %v209, %v822
    %v824 = vlaneseq
    %v825 = vshrl.u32 %v824, 7
    %v826 = vsub.s32 %v748, %v825
    %v827 = vrot.slane %v210, %v826
    %v828 = vlaneseq
    %v829 = vshrl.u32 %v828, 7
    %v830 = vsub.s32 %v748, %v829
    %v831 = vrot.slane %v211, %v830
    %v832 = vlaneseq
    %v833 = vshrl.u32 %v832, 7
    %v834 = vsub.s32 %v748, %v833
    %v835 = vrot.slane %v212, %v834
    %v836 = vlaneseq
    %v837 = vshrl.u32 %v836, 7
    %v838 = vsub.s32 %v748, %v837
    %v839 = vrot.slane %v213, %v838
    %v840 = vsel %vm266, %v815, %v811
    %v841 = vsel %vm268, %v819, %v840
    %v842 = vsel %vm270, %v823, %v841
    %v843 = vsel %vm272, %v827, %v842
    %v844 = vsel %vm274, %v831, %v843
    %v845 = vsel %vm276, %v835, %v844
    %vm848 = vcmask 56321
    %849 = vst.msk [vmem:[#allocation9 - $0x1] sm:$0xfe] %vm848, %v845
    %vm850 = vcmask 49152
    %851 = vst.msk [vmem:[#allocation9 + $0x7] sm:$0x1] %vm850, %v839
    // Predicated region
    $region18: #{tpu_custom_call.1} parent=1 // pred_check
      _
    $region19: #{tpu_custom_call.1} parent=1 // pred_check_branch
      %853 = sbr.rel (0) target = $region21
    $region20: #{tpu_custom_call.1} parent=1 // pred_region
      // Predicated region
      $region22: #{tpu_custom_call.1} parent=20 // pred_check
        _
      $region23: #{tpu_custom_call.1} parent=20 // pred_check_branch
        %855 = sbr.rel (0) target = $region25
      $region24: #{tpu_custom_call.1} parent=20 // pred_region
        // Predicated region
        $region26: #{tpu_custom_call.1} parent=24 // pred_check
          _
        $region27: #{tpu_custom_call.1} parent=24 // pred_check_branch
          %857 = sbr.rel target = $region29
        $region28: #{tpu_custom_call.1} parent=24 // pred_region
          // Predicated region
          $region41: #{tpu_custom_call.1} parent=28 // pred_check
            _
          $region42: #{tpu_custom_call.1} parent=28 // pred_check_branch
            %872 = sbr.rel (0) target = $region44
          $region43: #{tpu_custom_call.1} parent=28 // pred_region
            loop: start=0, step=1, limit=1
            $region45: #{tpu_custom_call.1} parent=43 // loop_pre_header
              _
            $region46: #{tpu_custom_call.1} parent=43 // loop_header
              %s875 = sphi 0, %s879
              %p876 = scmp.ge.s32.totalorder %s875, 1
              %s880 = sphi [#allocation7], [#allocation7]
              %s881 = sphi %s2, %s2
            $region47: #{tpu_custom_call.1} parent=43 // loop_header_branch
              %878 = sbr.rel (%p876) target = $region51
            $region48: #{tpu_custom_call.1} parent=43 // loop_body
              %v882 = vld [vmem:[%s880] sm:$0x3]
              %883 = vst [vmem:[%s881] sm:$0x3] %v882
            $region49: #{tpu_custom_call.1} parent=43 // loop_footer
              %s879 = sadd.s32 1, %s875
            $region50: #{tpu_custom_call.1} parent=43 // loop_footer_branch
              %874 = sbr.rel target = $region46
            $region51: #{tpu_custom_call.1} parent=43 // loop_exit
              _
          $region44: #{tpu_custom_call.1} parent=28 // pred_fallthru
            _
        $region29: #{tpu_custom_call.1} parent=24 // pred_fallthru
          _
        // Predicated region
        $region30: #{tpu_custom_call.1} parent=24 // pred_check
          _
        $region31: #{tpu_custom_call.1} parent=24 // pred_check_branch
          %859 = sbr.rel (0) target = $region33
        $region32: #{tpu_custom_call.1} parent=24 // pred_region
          loop: start=0, step=1, limit=1
          $region34: #{tpu_custom_call.1} parent=32 // loop_pre_header
            _
          $region35: #{tpu_custom_call.1} parent=32 // loop_header
            %s862 = sphi 0, %s866
            %p863 = scmp.ge.s32.totalorder %s862, 1
            %s867 = sphi [#allocation7], [#allocation7]
            %s868 = sphi %s2, %s2
          $region36: #{tpu_custom_call.1} parent=32 // loop_header_branch
            %865 = sbr.rel (%p863) target = $region40
          $region37: #{tpu_custom_call.1} parent=32 // loop_body
            %v869 = vld [vmem:[%s867] sm:$0x3]
            %870 = vst [vmem:[%s868] sm:$0x3] %v869
          $region38: #{tpu_custom_call.1} parent=32 // loop_footer
            %s866 = sadd.s32 1, %s862
          $region39: #{tpu_custom_call.1} parent=32 // loop_footer_branch
            %861 = sbr.rel target = $region35
          $region40: #{tpu_custom_call.1} parent=32 // loop_exit
            _
        $region33: #{tpu_custom_call.1} parent=24 // pred_fallthru
          _
      $region25: #{tpu_custom_call.1} parent=20 // pred_fallthru
        _
      %884 = vnop
    $region21: #{tpu_custom_call.1} parent=1 // pred_fallthru
      _
    // Predicated region
    $region52: #{tpu_custom_call.1} parent=1 // pred_check
      _
    $region53: #{tpu_custom_call.1} parent=1 // pred_check_branch
      %886 = sbr.rel (0) target = $region55
    $region54: #{tpu_custom_call.1} parent=1 // pred_region
      %s888 = ssub.s32 128, 32
      %889 = vsyncadd [#allocation4], %s888
      %s890 = sshll.u32 [#allocation8], 4
      %s891 = int_to_ptr.vmem [resolvable:$true] %s890
      %896 = dma.vmem_to_hbm [thread:$0]  %s891, 32, %s3, [#allocation4], 32, 32, 2
    $region55: #{tpu_custom_call.1} parent=1 // pred_fallthru
      _
    // Predicated region
    $region56: #{tpu_custom_call.1} parent=1 // pred_check
      _
    $region57: #{tpu_custom_call.1} parent=1 // pred_check_branch
      %898 = sbr.rel (0) target = $region59
    $region58: #{tpu_custom_call.1} parent=1 // pred_region
      %s900 = ssub.s32 128, 32
      %901 = vsyncadd [#allocation10], %s900
      %s902 = sshll.u32 [#allocation9], 4
      %s903 = int_to_ptr.vmem [resolvable:$true] %s902
      %908 = dma.vmem_to_hbm [thread:$0]  %s903, 32, %s4, [#allocation10], 32, 32, 2
    $region59: #{tpu_custom_call.1} parent=1 // pred_fallthru
      _
    // Predicated region
    $region60: #{tpu_custom_call.1} parent=1 // pred_check
      _
    $region61: #{tpu_custom_call.1} parent=1 // pred_check_branch
      %910 = sbr.rel (0) target = $region63
    $region62: #{tpu_custom_call.1} parent=1 // pred_region
      _
    $region63: #{tpu_custom_call.1} parent=1 // pred_fallthru
      _
    // Predicated region
    $region64: #{tpu_custom_call.1} parent=1 // pred_check
      _
    $region65: #{tpu_custom_call.1} parent=1 // pred_check_branch
      %912 = sbr.rel (0) target = $region67
    $region66: #{tpu_custom_call.1} parent=1 // pred_region
      %913 = dma.done [#allocation4], 128
    $region67: #{tpu_custom_call.1} parent=1 // pred_fallthru
      _
    // Predicated region
    $region68: #{tpu_custom_call.1} parent=1 // pred_check
      _
    $region69: #{tpu_custom_call.1} parent=1 // pred_check_branch
      %915 = sbr.rel (0) target = $region71
    $region70: #{tpu_custom_call.1} parent=1 // pred_region
      %916 = dma.done [#allocation10], 128
    $region71: #{tpu_custom_call.1} parent=1 // pred_fallthru
      _
    %917 = vsyncpa [#allocation3], 1
    %918 = vsyncpa [#allocation6], 1
    %919 = vsyncpa [#allocation4], 1
    %920 = vsyncpa [#allocation10], 1

</llo_original>
